<compile_context>
chip_gen: v7x
topology: tpu7x:2x2x1
jax: 0.10.0
libtpu: 0.0.40
codegen_flags: <defaults>
</compile_context>

<pallas_src>
import functools

import jax
import jax.numpy as jnp
from jax import lax
from jax.experimental import pallas as pl
from jax.experimental.pallas import tpu as pltpu


# ---------------------------------- kernel -----------------------------------

def _instance_norm_kernel(x_ref, o_ref, *, eps, inv_hw):
    # Each row of the (TR, HW) block is one (n, c) instance; reduce over HW.
    x = x_ref[...].astype(jnp.float32)
    s1 = jnp.sum(x, axis=-1, keepdims=True)          # one XLU pass: sum
    s2 = jnp.sum(x * x, axis=-1, keepdims=True)      # fused sum of squares
    mu = s1 * inv_hw
    var = jnp.maximum(s2 * inv_hw - mu * mu, 0.0)    # biased var, clamp cancellation
    scale = lax.rsqrt(var + eps)                     # EUP rsqrt, one per row
    o_ref[...] = ((x - mu) * scale).astype(o_ref.dtype)


# ------------------------------ tiling helpers --------------------------------

def _sublane_align(dtype):
    itemsize = jnp.dtype(dtype).itemsize
    if itemsize >= 4:
        return 8          # f32
    if itemsize == 2:
        return 16         # bf16 / fp16 pack rows in sublane pairs
    return 32             # int8 / fp8 pack in quads


def _tpu_info():
    """Return (vmem_capacity_bytes, num_tensorcores_heuristic)."""
    vmem_cap = 64 << 20   # conservative (v7x-safe) fallback
    try:
        info = pltpu.get_tpu_info()
        vmem_cap = int(info.vmem_capacity_bytes)
    except Exception:
        pass
    # v7x exposes 64 MiB VMEM per TC and has 2 TCs/chip; v5e/v6e have 128 MiB, 1 TC.
    num_tc = 2 if vmem_cap < (96 << 20) else 1
    return vmem_cap, num_tc


def _pick_row_tile(rows_padded, hw, itemsize, align, budget_bytes, num_tc):
    """Largest sublane-aligned row tile dividing rows_padded within budget.

    budget_bytes covers the full double-buffered in+out footprint (4x tile).
    """
    bytes_per_row = hw * itemsize
    max_rows = budget_bytes // max(1, 4 * bytes_per_row)
    max_rows = (max_rows // align) * align
    if max_rows < align:
        # TODO(synk): for enormous H*W a single aligned row-group exceeds the
        # budget; would need a 2-D (sublane, lane) reshape of each row or a
        # second "arbitrary" HW grid axis with sum/sumsq accumulators.
        max_rows = align
    # On dual-TC chips, keep >= 2 grid steps so the "parallel" axis shards.
    if num_tc > 1 and rows_padded >= 2 * align:
        cap = ((rows_padded // 2) // align) * align
        max_rows = min(max_rows, max(align, cap))
    tr = min(rows_padded, max_rows)
    tr = max(align, (tr // align) * align)
    while rows_padded % tr != 0:
        tr -= align
    return tr


# --------------------------------- wrapper ------------------------------------

def instance_norm(x, eps=1e-8):
    """x: (N, C, H, W). Returns (x - mean_{H,W}) * rsqrt(E[(x-mu)^2]_{H,W} + eps)."""
    N, C, H, W = x.shape
    rows, hw = N * C, H * W
    itemsize = jnp.dtype(x.dtype).itemsize

    xf = x.reshape(rows, hw)                            # lane-dense layout

    # Pad rows up to the dtype's sublane packing so every block is aligned
    # (padded rows are normalized independently and sliced off afterwards).
    align = _sublane_align(x.dtype)
    rows_p = ((rows + align - 1) // align) * align
    if rows_p != rows:
        xf = jnp.pad(xf, ((0, rows_p - rows), (0, 0)))

    vmem_cap, num_tc = _tpu_info()
    budget = (48 << 20) if vmem_cap >= (96 << 20) else (32 << 20)
    tr = _pick_row_tile(rows_p, hw, itemsize, align, budget, num_tc)

    per_step = 4 * tr * hw * itemsize                   # double-buffered in + out
    vmem_limit = int(min(max(per_step + (8 << 20), 32 << 20),
                         vmem_cap - (16 << 20)))

    grid = (rows_p // tr,)                              # (1,) at small shapes

    cost = pl.CostEstimate(
        flops=6 * rows_p * hw,
        transcendentals=rows_p,
        bytes_accessed=2 * rows_p * hw * itemsize,
    )

    out = pl.pallas_call(
        functools.partial(_instance_norm_kernel,
                          eps=float(eps), inv_hw=1.0 / float(hw)),
        out_shape=jax.ShapeDtypeStruct((rows_p, hw), x.dtype),
        grid=grid,
        in_specs=[pl.BlockSpec((tr, hw), lambda r: (r, 0))],
        out_specs=pl.BlockSpec((tr, hw), lambda r: (r, 0)),
        compiler_params=pltpu.CompilerParams(
            dimension_semantics=("parallel",),          # rows independent
            vmem_limit_bytes=vmem_limit),
        cost_estimate=cost,
    )(xf)

    if rows_p != rows:
        out = out[:rows]
    return out.reshape(N, C, H, W)


# -------------------------------- reference ------------------------------------

def _reference(x, eps=1e-8):
    mu = x.mean((2, 3), keepdims=True)
    xc = x - mu
    return xc * lax.rsqrt((xc * xc).mean((2, 3), keepdims=True) + eps)


# ----------------------------------- main --------------------------------------

if __name__ == "__main__":
    N, C, H, W = 2, 4, 16, 16
    key = jax.random.PRNGKey(0)
    x = jax.random.normal(key, (N, C, H, W), dtype=jnp.float32)

    out = jax.block_until_ready(instance_norm(x, eps=1e-8))
    ref = _reference(x, eps=1e-8)

    assert out.shape == (N, C, H, W)
    assert jnp.allclose(out, ref, rtol=1e-5, atol=1e-5), float(
        jnp.max(jnp.abs(out - ref)))

    print("KERNEL_OK")
</pallas_src>

<mosaic_0001>
module attributes {stable_mosaic.version = 11 : i64} {
  func.func @_instance_norm_kernel(%arg0: i32, %arg1: memref<8x256xf32, #tpu.memory_space<vmem>>, %arg2: memref<8x256xf32, #tpu.memory_space<vmem>>) attributes {dimension_semantics = [#tpu.dimension_semantics<parallel>], iteration_bounds = array<i64: 1>, scalar_prefetch = 0 : i64, scratch_operands = 0 : i64, tpu.core_type = #tpu.core_type<tc>, window_params = [{transform_indices = @transform_0, window_bounds = array<i64: 8, 256>}, {transform_indices = @transform_1, window_bounds = array<i64: 8, 256>}]} {
    %c0 = arith.constant 0 : index
    %c0_0 = arith.constant 0 : index
    %0 = vector.load %arg1[%c0, %c0_0] : memref<8x256xf32, #tpu.memory_space<vmem>>, vector<8x256xf32>
    %cst = arith.constant dense<0.000000e+00> : vector<8xf32>
    %1 = vector.multi_reduction <add>, %0, %cst [1] : vector<8x256xf32> to vector<8xf32>
    %2 = vector.shape_cast %1 : vector<8xf32> to vector<8x1xf32>
    %3 = arith.mulf %0, %0 : vector<8x256xf32>
    %cst_1 = arith.constant dense<0.000000e+00> : vector<8xf32>
    %4 = vector.multi_reduction <add>, %3, %cst_1 [1] : vector<8x256xf32> to vector<8xf32>
    %5 = vector.shape_cast %4 : vector<8xf32> to vector<8x1xf32>
    %cst_2 = arith.constant 3.906250e-03 : f32
    %6 = vector.broadcast %cst_2 : f32 to vector<8x1xf32>
    %7 = arith.mulf %2, %6 : vector<8x1xf32>
    %cst_3 = arith.constant 3.906250e-03 : f32
    %8 = vector.broadcast %cst_3 : f32 to vector<8x1xf32>
    %9 = arith.mulf %5, %8 : vector<8x1xf32>
    %10 = arith.mulf %7, %7 : vector<8x1xf32>
    %11 = arith.subf %9, %10 : vector<8x1xf32>
    %cst_4 = arith.constant 0.000000e+00 : f32
    %12 = vector.broadcast %cst_4 : f32 to vector<8x1xf32>
    %13 = arith.maximumf %11, %12 : vector<8x1xf32>
    %cst_5 = arith.constant 9.99999993E-9 : f32
    %14 = vector.broadcast %cst_5 : f32 to vector<8x1xf32>
    %15 = arith.addf %13, %14 : vector<8x1xf32>
    %16 = math.rsqrt %15 : vector<8x1xf32>
    %17 = vector.broadcast %7 : vector<8x1xf32> to vector<8x256xf32>
    %18 = arith.subf %0, %17 : vector<8x256xf32>
    %19 = vector.broadcast %16 : vector<8x1xf32> to vector<8x256xf32>
    %20 = arith.mulf %18, %19 : vector<8x256xf32>
    %c0_6 = arith.constant 0 : index
    %c0_7 = arith.constant 0 : index
    %21 = vector.load %arg2[%c0_6, %c0_7] : memref<8x256xf32, #tpu.memory_space<vmem>>, vector<8x256xf32>
    tpu.vector_store %arg2[%c0_6, %c0_7], %20 {strides = array<i32>} : memref<8x256xf32, #tpu.memory_space<vmem>>, vector<8x256xf32>,
    return
  }
  func.func @transform_0(%arg0: i32) -> (i32, i32) {
    %c0_i32 = arith.constant 0 : i32
    %c0_i32_0 = arith.constant 0 : i32
    return %arg0, %c0_i32 : i32, i32
  }
  func.func @transform_1(%arg0: i32) -> (i32, i32) {
    %c0_i32 = arith.constant 0 : i32
    %c0_i32_0 = arith.constant 0 : i32
    return %arg0, %c0_i32 : i32, i32
  }
}

</mosaic_0001>

<llo_original>
// kernel: tpu_custom_call.1
$region0: #{tpu_custom_call.1}
  #allocation0 [shape = 'u32[]', space=smem, size = 0x4, offset = 0x4, fixed_abs, tag = 'smem constant byte address 0x4 - core index']
  #allocation1 [shape = 'u32[144,128]{1,0:T(1,128)}', space=vmem, size = 0x12000, scoped, tag = 'internal scratch']
  %s0 = inlined_call_operand.hbm [shape: f32[8,256], index: 0, kind: input, shape index: {}]
  %s1 = inlined_call_operand.hbm [shape: f32[8,256], index: 1, kind: output, shape index: {}]
  %s2 = sld [smem:[#allocation0]]
  $region18: #{tpu_custom_call.1} parent=0
    _
  %s4 = ssub.s32 1, %s2
  %s5 = scalar_select 0, %s4, %s2
  $region1: #{tpu_custom_call.1} parent=0
    #allocation2 [shape = 'u8[8192]{0}', space=vmem, size = 0x2000, scoped, tag = 'input window, operand 0, single buffered']
    #allocation3 [shape = 's32[1]{0}', space=sflag, size = 0x4, scoped, tag = 'scoped memory for tpu_custom_call.1']
    #allocation4 [shape = 's32[1]{0}', space=sflag, size = 0x4, scoped, tag = 'scoped memory for tpu_custom_call.1']
    #allocation5 [shape = 'u8[8192]{0}', space=vmem, size = 0x2000, scoped, tag = 'output window, operand 0, single buffered']
    %6 = vsyncpa [#allocation3], 0
    %7 = vsyncpa [#allocation4], 0
    // Predicated region
    $region2: #{tpu_custom_call.1} parent=1 // pred_check
      _
    $region3: #{tpu_custom_call.1} parent=1 // pred_check_branch
      %9 = sbr.rel (0) target = $region5
    $region4: #{tpu_custom_call.1} parent=1 // pred_region
      %s11 = ssub.s32 256, 256
      %12 = vsyncadd [#allocation3], %s11
      %s14 = sshll.u32 [#allocation2], 4
      %s15 = int_to_ptr.vmem [resolvable:$true] %s14
      %17 = dma.hbm_to_vmem [thread:$0]  %s0, 256, %s15, [#allocation3]
    $region5: #{tpu_custom_call.1} parent=1 // pred_fallthru
      _
    // Predicated region
    $region6: #{tpu_custom_call.1} parent=1 // pred_check
      _
    $region7: #{tpu_custom_call.1} parent=1 // pred_check_branch
      %19 = sbr.rel (0) target = $region9
    $region8: #{tpu_custom_call.1} parent=1 // pred_region
      %20 = dma.done [#allocation3], 256
    $region9: #{tpu_custom_call.1} parent=1 // pred_fallthru
      _
    %v21 = vld [vmem:[#allocation2] sm:$0xff]
    %v22 = vld [vmem:[#allocation2 + $0x8] sm:$0xff]
    %v23 = vadd.f32 %v21, %v22
    %24 = vadd.xlane.f32.xlu0 %v23
    %v25 = vpop.xlane.xlu0 %24
    %v26 = vmul.f32 %v21, %v21
    %v27 = vmul.f32 %v22, %v22
    %v28 = vadd.f32 %v26, %v27
    %29 = vadd.xlane.f32.xlu0 %v28
    %v30 = vpop.xlane.xlu0 %29
    %v31 = vmul.f32 %v25, 0.00390625
    %v32 = vmul.f32 %v30, 0.00390625
    %v33 = vmul.f32 %v31, %v31
    %v34 = vsub.f32 %v32, %v33
    %v35 = vmax.f32 %v34, 0.0
    %v36 = vadd.f32 %v35, 1e-08
    %v37 = vrsqrt.pop %v36
    %v38 = vsub.f32 %v21, %v31
    %v39 = vsub.f32 %v22, %v31
    %v40 = vmul.f32 %v38, %v37
    %v41 = vmul.f32 %v39, %v37
    %42 = vst [vmem:[#allocation5] sm:$0xff] %v40
    %43 = vst [vmem:[#allocation5 + $0x8] sm:$0xff] %v41
    // Predicated region
    $region10: #{tpu_custom_call.1} parent=1 // pred_check
      _
    $region11: #{tpu_custom_call.1} parent=1 // pred_check_branch
      %45 = sbr.rel (0) target = $region13
    $region12: #{tpu_custom_call.1} parent=1 // pred_region
      %s47 = ssub.s32 256, 256
      %48 = vsyncadd [#allocation4], %s47
      %s50 = sshll.u32 [#allocation5], 4
      %s51 = int_to_ptr.vmem [resolvable:$true] %s50
      %53 = dma.vmem_to_hbm [thread:$0]  %s51, 256, %s1, [#allocation4]
    $region13: #{tpu_custom_call.1} parent=1 // pred_fallthru
      _
    // Predicated region
    $region14: #{tpu_custom_call.1} parent=1 // pred_check
      _
    $region15: #{tpu_custom_call.1} parent=1 // pred_check_branch
      %55 = sbr.rel (0) target = $region17
    $region16: #{tpu_custom_call.1} parent=1 // pred_region
      %56 = dma.done [#allocation4], 256
    $region17: #{tpu_custom_call.1} parent=1 // pred_fallthru
      _
    %57 = vsyncpa [#allocation3], 1
    %58 = vsyncpa [#allocation4], 1

</llo_original>
